<compile_context>
chip_gen: v7x
topology: tpu7x:2x2x1
jax: 0.10.0
libtpu: 0.0.40
codegen_flags: <defaults>
</compile_context>

<pallas_src>
import jax
import jax.numpy as jnp
from jax.experimental import pallas as pl
from jax.experimental.pallas import tpu as pltpu

OTHER = 1.0       # the module-level `other = 1`
TILE_ROWS = 1024  # default batch-tile size (512-2048 is the measured sweet spot)


def _round_up(x, m):
    return ((x + m - 1) // m) * m


def linear_sub_relu_kernel(x_ref, w_ref, o_ref):
    # x_ref: (TM/2, 256)  -- two logical batch rows packed per physical row
    # w_ref: (256, 128)   -- block-diagonal [[W^T, 0], [0, W^T]], VMEM-resident
    # o_ref: (TM/2, 128)  -- lane-dense row-major view of the (TM, 64) output
    y = jnp.dot(x_ref[...], w_ref[...], preferred_element_type=jnp.float32)
    o_ref[...] = jnp.maximum(y - OTHER, 0.0).astype(o_ref.dtype)


def model_forward(x1, w_t, *, tile_rows=TILE_ROWS):
    """x1: (B, 128) f32, w_t: (128, 64) f32 (transposed PyTorch Linear weight)."""
    B, K = x1.shape
    N = w_t.shape[1]
    assert K == 128 and w_t.shape == (128, 64)

    # Lane-dense repack: block-diagonal weight so one MXU matmul produces the
    # (B/2, 128) row-major view of the (B, 64) output directly.
    w_big = jnp.zeros((2 * K, 2 * N), dtype=w_t.dtype)
    w_big = w_big.at[:K, :N].set(w_t).at[K:, N:].set(w_t)

    # Batch tile: multiple of 16 so the packed tile (TM/2 rows) is a multiple
    # of 8 sublanes. Pad B up to a whole number of tiles.
    tm = _round_up(min(tile_rows, _round_up(B, 16)), 16)
    Bp = _round_up(B, tm)
    if Bp != B:
        x1 = jnp.pad(x1, ((0, Bp - B), (0, 0)))

    x2 = x1.reshape(Bp // 2, 2 * K)   # free row-major view: 2 rows -> 1 row
    tm2 = tm // 2
    grid = (Bp // tm,)

    out2 = pl.pallas_call(
        linear_sub_relu_kernel,
        out_shape=jax.ShapeDtypeStruct((Bp // 2, 2 * N), jnp.float32),
        grid_spec=pltpu.PrefetchScalarGridSpec(
            num_scalar_prefetch=0,
            grid=grid,
            in_specs=[
                pl.BlockSpec((tm2, 2 * K), lambda i: (i, 0)),
                pl.BlockSpec((2 * K, 2 * N), lambda i: (0, 0)),  # weight stays resident
            ],
            out_specs=pl.BlockSpec((tm2, 2 * N), lambda i: (i, 0)),
        ),
        compiler_params=pltpu.CompilerParams(
            # Batch tiles are independent -> shard across v7x's two TensorCores.
            dimension_semantics=("parallel",),
        ),
    )(x2, w_big)

    # Reshape the lane-dense slab back to (B, 64) and drop the pad rows.
    return out2.reshape(Bp, N)[:B]


if __name__ == "__main__":
    key = jax.random.PRNGKey(0)
    kx, kw, kx2 = jax.random.split(key, 3)

    # PyTorch Linear weight shape is (64, 128); store the transpose (128, 64).
    bound = 1.0 / jnp.sqrt(128.0)
    w = jax.random.uniform(kw, (64, 128), dtype=jnp.float32,
                           minval=-bound, maxval=bound)
    w_t = w.T  # (128, 64)

    # Case 1: the module's shape, x1 = randn(1, 128).
    x1 = jax.random.normal(kx, (1, 128), dtype=jnp.float32)
    out = jax.block_until_ready(model_forward(x1, w_t))
    ref = jnp.maximum(x1 @ w_t - OTHER, 0.0)
    assert out.shape == (1, 64)
    assert jnp.allclose(out, ref, atol=1e-5, rtol=1e-5)

    # Case 2: small multi-tile batch (B=40, not a multiple of 16) with a tiny
    # tile to exercise padding + the pipelined multi-step grid path.
    xb = jax.random.normal(kx2, (40, 128), dtype=jnp.float32)
    outb = jax.block_until_ready(model_forward(xb, w_t, tile_rows=16))
    refb = jnp.maximum(xb @ w_t - OTHER, 0.0)
    assert outb.shape == (40, 64)
    assert jnp.allclose(outb, refb, atol=1e-5, rtol=1e-5)

    print("KERNEL_OK")
</pallas_src>

<mosaic_0001>
module attributes {stable_mosaic.version = 11 : i64} {
  func.func @linear_sub_relu_kernel(%arg0: i32, %arg1: memref<8x256xf32, #tpu.memory_space<vmem>>, %arg2: memref<256x128xf32, #tpu.memory_space<vmem>>, %arg3: memref<8x128xf32, #tpu.memory_space<vmem>>) attributes {dimension_semantics = [#tpu.dimension_semantics<parallel>], iteration_bounds = array<i64: 1>, scalar_prefetch = 0 : i64, scratch_operands = 0 : i64, tpu.core_type = #tpu.core_type<tc>, window_params = [{transform_indices = @transform_0, window_bounds = array<i64: 8, 256>}, {pipeline_mode = #tpu.pipeline_mode<synchronous>, transform_indices = @transform_1, window_bounds = array<i64: 256, 128>}, {transform_indices = @transform_2, window_bounds = array<i64: 8, 128>}]} {
    %c0 = arith.constant 0 : index
    %c0_0 = arith.constant 0 : index
    %0 = vector.load %arg1[%c0, %c0_0] : memref<8x256xf32, #tpu.memory_space<vmem>>, vector<8x256xf32>
    %c0_1 = arith.constant 0 : index
    %c0_2 = arith.constant 0 : index
    %1 = vector.load %arg2[%c0_1, %c0_2] : memref<256x128xf32, #tpu.memory_space<vmem>>, vector<256x128xf32>
    %cst = arith.constant dense<0.000000e+00> : vector<8x128xf32>
    %2 = tpu.matmul %0, %1, %cst {dimension_numbers = #tpu.dot_dimension_numbers<[1], [0], [0], [1], [0, 0, 1, 1], [], []>} : vector<8x256xf32>, vector<256x128xf32>, vector<8x128xf32> -> vector<8x128xf32>
    %cst_3 = arith.constant 1.000000e+00 : f32
    %3 = vector.broadcast %cst_3 : f32 to vector<8x128xf32>
    %4 = arith.subf %2, %3 : vector<8x128xf32>
    %cst_4 = arith.constant 0.000000e+00 : f32
    %5 = vector.broadcast %cst_4 : f32 to vector<8x128xf32>
    %6 = arith.maximumf %4, %5 : vector<8x128xf32>
    %c0_5 = arith.constant 0 : index
    %c0_6 = arith.constant 0 : index
    %7 = vector.load %arg3[%c0_5, %c0_6] : memref<8x128xf32, #tpu.memory_space<vmem>>, vector<8x128xf32>
    tpu.vector_store %arg3[%c0_5, %c0_6], %6 {strides = array<i32>} : memref<8x128xf32, #tpu.memory_space<vmem>>, vector<8x128xf32>,
    return
  }
  func.func @transform_0(%arg0: i32) -> (i32, i32) {
    %c0_i32 = arith.constant 0 : i32
    %c0_i32_0 = arith.constant 0 : i32
    return %arg0, %c0_i32 : i32, i32
  }
  func.func @transform_1(%arg0: i32) -> (i32, i32) {
    %c0_i32 = arith.constant 0 : i32
    %c0_i32_0 = arith.constant 0 : i32
    %c0_i32_1 = arith.constant 0 : i32
    return %c0_i32, %c0_i32_0 : i32, i32
  }
  func.func @transform_2(%arg0: i32) -> (i32, i32) {
    %c0_i32 = arith.constant 0 : i32
    %c0_i32_0 = arith.constant 0 : i32
    return %arg0, %c0_i32 : i32, i32
  }
}

</mosaic_0001>

<llo_original>
// kernel: tpu_custom_call.1
$region0: #{tpu_custom_call.1}
  #allocation0 [shape = 'u32[]', space=smem, size = 0x4, offset = 0x4, fixed_abs, tag = 'smem constant byte address 0x4 - core index']
  #allocation1 [shape = 'u32[144,128]{1,0:T(1,128)}', space=vmem, size = 0x12000, scoped, tag = 'internal scratch']
  %s0 = inlined_call_operand.hbm [shape: f32[8,256], index: 0, kind: input, shape index: {}]
  %s1 = inlined_call_operand.hbm [shape: f32[256,128], index: 1, kind: input, shape index: {}]
  %s2 = inlined_call_operand.hbm [shape: f32[8,128], index: 2, kind: output, shape index: {}]
  %s3 = sld [smem:[#allocation0]]
  $region26: #{tpu_custom_call.1} parent=0
    _
  %s5 = ssub.s32 1, %s3
  %s6 = scalar_select 0, %s5, %s3
  $region1: #{tpu_custom_call.1} parent=0
    #allocation2 [shape = 'u8[8192]{0}', space=vmem, size = 0x2000, scoped, tag = 'input window, operand 0, single buffered']
    #allocation3 [shape = 's32[1]{0}', space=sflag, size = 0x4, scoped, tag = 'scoped memory for tpu_custom_call.1']
    #allocation4 [shape = 's32[1]{0}', space=sflag, size = 0x4, scoped, tag = 'scoped memory for tpu_custom_call.1']
    #allocation5 [shape = 'u8[131072]{0}', space=vmem, size = 0x20000, scoped, tag = 'input window, operand 1, single buffered']
    #allocation6 [shape = 's32[1]{0}', space=sflag, size = 0x4, scoped, tag = 'scoped memory for tpu_custom_call.1']
    #allocation7 [shape = 'u8[4096]{0}', space=vmem, size = 0x1000, scoped, tag = 'output window, operand 0, single buffered']
    %7 = vsyncpa [#allocation3], 0
    %8 = vsyncpa [#allocation6], 0
    %9 = vsyncpa [#allocation4], 0
    // Predicated region
    $region2: #{tpu_custom_call.1} parent=1 // pred_check
      _
    $region3: #{tpu_custom_call.1} parent=1 // pred_check_branch
      %11 = sbr.rel (0) target = $region5
    $region4: #{tpu_custom_call.1} parent=1 // pred_region
      %s13 = ssub.s32 256, 256
      %14 = vsyncadd [#allocation3], %s13
      %s16 = sshll.u32 [#allocation2], 4
      %s17 = int_to_ptr.vmem [resolvable:$true] %s16
      %19 = dma.hbm_to_vmem [thread:$0]  %s0, 256, %s17, [#allocation3]
    $region5: #{tpu_custom_call.1} parent=1 // pred_fallthru
      _
    // Predicated region
    $region6: #{tpu_custom_call.1} parent=1 // pred_check
      _
    $region7: #{tpu_custom_call.1} parent=1 // pred_check_branch
      %21 = sbr.rel (0) target = $region9
    $region8: #{tpu_custom_call.1} parent=1 // pred_region
      %s23 = ssub.s32 4096, 4096
      %24 = vsyncadd [#allocation6], %s23
      %s25 = sshll.u32 [#allocation5], 4
      %s26 = int_to_ptr.vmem [resolvable:$true] %s25
      %31 = dma.hbm_to_vmem [thread:$0]  %s1, 4096, %s26, [#allocation6], 128, 128, 8
    $region9: #{tpu_custom_call.1} parent=1 // pred_fallthru
      _
    // Predicated region
    $region10: #{tpu_custom_call.1} parent=1 // pred_check
      _
    $region11: #{tpu_custom_call.1} parent=1 // pred_check_branch
      %33 = sbr.rel (0) target = $region13
    $region12: #{tpu_custom_call.1} parent=1 // pred_region
      %34 = dma.done [#allocation3], 256
    $region13: #{tpu_custom_call.1} parent=1 // pred_fallthru
      _
    // Predicated region
    $region14: #{tpu_custom_call.1} parent=1 // pred_check
      _
    $region15: #{tpu_custom_call.1} parent=1 // pred_check_branch
      %36 = sbr.rel (0) target = $region17
    $region16: #{tpu_custom_call.1} parent=1 // pred_region
      %37 = dma.done [#allocation6], 4096
    $region17: #{tpu_custom_call.1} parent=1 // pred_fallthru
      _
    %v38 = vld [vmem:[#allocation2] sm:$0xff]
    %v39 = vld [vmem:[#allocation2 + $0x8] sm:$0xff]
    %v40 = vld [vmem:[#allocation5] sm:$0xff]
    %v41 = vld [vmem:[#allocation5 + $0x8] sm:$0xff]
    %v42 = vld [vmem:[#allocation5 + $0x10] sm:$0xff]
    %v43 = vld [vmem:[#allocation5 + $0x18] sm:$0xff]
    %v44 = vld [vmem:[#allocation5 + $0x20] sm:$0xff]
    %v45 = vld [vmem:[#allocation5 + $0x28] sm:$0xff]
    %v46 = vld [vmem:[#allocation5 + $0x30] sm:$0xff]
    %v47 = vld [vmem:[#allocation5 + $0x38] sm:$0xff]
    %v48 = vld [vmem:[#allocation5 + $0x40] sm:$0xff]
    %v49 = vld [vmem:[#allocation5 + $0x48] sm:$0xff]
    %v50 = vld [vmem:[#allocation5 + $0x50] sm:$0xff]
    %v51 = vld [vmem:[#allocation5 + $0x58] sm:$0xff]
    %v52 = vld [vmem:[#allocation5 + $0x60] sm:$0xff]
    %v53 = vld [vmem:[#allocation5 + $0x68] sm:$0xff]
    %v54 = vld [vmem:[#allocation5 + $0x70] sm:$0xff]
    %v55 = vld [vmem:[#allocation5 + $0x78] sm:$0xff]
    %v56 = vld [vmem:[#allocation5 + $0x80] sm:$0xff]
    %v57 = vld [vmem:[#allocation5 + $0x88] sm:$0xff]
    %v58 = vld [vmem:[#allocation5 + $0x90] sm:$0xff]
    %v59 = vld [vmem:[#allocation5 + $0x98] sm:$0xff]
    %v60 = vld [vmem:[#allocation5 + $0xa0] sm:$0xff]
    %v61 = vld [vmem:[#allocation5 + $0xa8] sm:$0xff]
    %v62 = vld [vmem:[#allocation5 + $0xb0] sm:$0xff]
    %v63 = vld [vmem:[#allocation5 + $0xb8] sm:$0xff]
    %v64 = vld [vmem:[#allocation5 + $0xc0] sm:$0xff]
    %v65 = vld [vmem:[#allocation5 + $0xc8] sm:$0xff]
    %v66 = vld [vmem:[#allocation5 + $0xd0] sm:$0xff]
    %v67 = vld [vmem:[#allocation5 + $0xd8] sm:$0xff]
    %v68 = vld [vmem:[#allocation5 + $0xe0] sm:$0xff]
    %v69 = vld [vmem:[#allocation5 + $0xe8] sm:$0xff]
    %v70 = vld [vmem:[#allocation5 + $0xf0] sm:$0xff]
    %v71 = vld [vmem:[#allocation5 + $0xf8] sm:$0xff]
    %72 = vmatprep.subr.mxu0 0.0
    %73 = vmatpush1.msra.mxu0 %v40
    %74 = vmatprep.subr.mxu0 0.0
    %75 = vmatpush1.msra.mxu0 %v41
    %76 = vmatprep.subr.mxu0 0.0
    %77 = vmatpush1.msra.mxu0 %v42
    %78 = vmatprep.subr.mxu0 0.0
    %79 = vmatpush1.msra.mxu0 %v43
    %80 = vmatprep.subr.mxu0 0.0
    %81 = vmatpush1.msra.mxu0 %v44
    %82 = vmatprep.subr.mxu0 0.0
    %83 = vmatpush1.msra.mxu0 %v45
    %84 = vmatprep.subr.mxu0 0.0
    %85 = vmatpush1.msra.mxu0 %v46
    %86 = vmatprep.subr.mxu0 0.0
    %87 = vmatpush1.msra.mxu0 %v47
    %88 = vmatprep.subr.mxu0 0.0
    %89 = vmatpush1.msra.mxu0 %v48
    %90 = vmatprep.subr.mxu0 0.0
    %91 = vmatpush1.msra.mxu0 %v49
    %92 = vmatprep.subr.mxu0 0.0
    %93 = vmatpush1.msra.mxu0 %v50
    %94 = vmatprep.subr.mxu0 0.0
    %95 = vmatpush1.msra.mxu0 %v51
    %96 = vmatprep.subr.mxu0 0.0
    %97 = vmatpush1.msra.mxu0 %v52
    %98 = vmatprep.subr.mxu0 0.0
    %99 = vmatpush1.msra.mxu0 %v53
    %100 = vmatprep.subr.mxu0 0.0
    %101 = vmatpush1.msra.mxu0 %v54
    %102 = vmatprep.subr.mxu0 0.0
    %103 = vmatpush1.msra.mxu0 %v55
    %104 = vmatprep.subr.mxu0 0.0
    %105 = vmatpush1.msra.mxu0 %v56
    %106 = vmatprep.subr.mxu0 0.0
    %107 = vmatpush1.msra.mxu0 %v57
    %108 = vmatprep.subr.mxu0 0.0
    %109 = vmatpush1.msra.mxu0 %v58
    %110 = vmatprep.subr.mxu0 0.0
    %111 = vmatpush1.msra.mxu0 %v59
    %112 = vmatprep.subr.mxu0 0.0
    %113 = vmatpush1.msra.mxu0 %v60
    %114 = vmatprep.subr.mxu0 0.0
    %115 = vmatpush1.msra.mxu0 %v61
    %116 = vmatprep.subr.mxu0 0.0
    %117 = vmatpush1.msra.mxu0 %v62
    %118 = vmatprep.subr.mxu0 0.0
    %119 = vmatpush1.msra.mxu0 %v63
    %120 = vmatprep.subr.mxu0 0.0
    %121 = vmatpush1.msra.mxu0 %v64
    %122 = vmatprep.subr.mxu0 0.0
    %123 = vmatpush1.msra.mxu0 %v65
    %124 = vmatprep.subr.mxu0 0.0
    %125 = vmatpush1.msra.mxu0 %v66
    %126 = vmatprep.subr.mxu0 0.0
    %127 = vmatpush1.msra.mxu0 %v67
    %128 = vmatprep.subr.mxu0 0.0
    %129 = vmatpush1.msra.mxu0 %v68
    %130 = vmatprep.subr.mxu0 0.0
    %131 = vmatpush1.msra.mxu0 %v69
    %132 = vmatprep.subr.mxu0 0.0
    %133 = vmatpush1.msra.mxu0 %v70
    %134 = vmatprep.subr.mxu0 0.0
    %135 = vmatpush1.msra.mxu0 %v71
    %136 = vmatprep.mubr.f32.mxu0 %v39
    %137 = vmatmul.mubr.f32.gmra.mrb[0].mxu0 %v38
    %v138 = vpop.f32.mrb[0].mxu0
    %v139 = vadd.f32 0.0, %v138
    %v140 = vpop.f32.mrb[0].mxu0
    %141 = vdwg.mxu0
    %v142 = vsub.f32 %v139, 1.0
    %v143 = vmax.f32 %v142, 0.0
    %144 = vst [vmem:[#allocation7] sm:$0xff] %v143
    // Predicated region
    $region18: #{tpu_custom_call.1} parent=1 // pred_check
      _
    $region19: #{tpu_custom_call.1} parent=1 // pred_check_branch
      %146 = sbr.rel (0) target = $region21
    $region20: #{tpu_custom_call.1} parent=1 // pred_region
      %s148 = ssub.s32 128, 128
      %149 = vsyncadd [#allocation4], %s148
      %s151 = sshll.u32 [#allocation7], 4
      %s152 = int_to_ptr.vmem [resolvable:$true] %s151
      %154 = dma.vmem_to_hbm [thread:$0]  %s152, 128, %s2, [#allocation4]
    $region21: #{tpu_custom_call.1} parent=1 // pred_fallthru
      _
    // Predicated region
    $region22: #{tpu_custom_call.1} parent=1 // pred_check
      _
    $region23: #{tpu_custom_call.1} parent=1 // pred_check_branch
      %156 = sbr.rel (0) target = $region25
    $region24: #{tpu_custom_call.1} parent=1 // pred_region
      %157 = dma.done [#allocation4], 128
    $region25: #{tpu_custom_call.1} parent=1 // pred_fallthru
      _
    %158 = vsyncpa [#allocation3], 1
    %159 = vsyncpa [#allocation6], 1
    %160 = vsyncpa [#allocation4], 1

</llo_original>
